<compile_context>
chip_gen: v7x
topology: tpu7x:2x2x1
jax: 0.10.0
libtpu: 0.0.40
codegen_flags: <defaults>
</compile_context>

<pallas_src>
import jax
import jax.numpy as jnp
from jax.experimental import pallas as pl
from jax.experimental.pallas import tpu as pltpu


def _round_up(x, m):
    return ((x + m - 1) // m) * m


# ---------------------------------------------------------------------------
# Kernel: push one batch tile through the whole fused network.
# ---------------------------------------------------------------------------
def _mmr_kernel(x_ref,
                w1_ref, b1_ref,   # block-diag [wt1 | wa1]        (K_pad, 2H)
                w2_ref, b2_ref,   # block-diag [wt2 | wa2]        (2H, 2H)
                w3_ref, b3_ref,   # fusion layer 1 == stacked wf1 (2H, H)
                w4_ref, b4_ref,   # fusion layer 2, lane-padded   (H, OUT_pad)
                out_ref):
    f32 = jnp.float32
    x = x_ref[...]
    # text/audio first Linear (fused block-diagonal) + ReLU
    h = jnp.dot(x, w1_ref[...], preferred_element_type=f32) + b1_ref[...]
    h = jnp.maximum(h, 0.0)
    # text/audio second Linear (fused block-diagonal) + ReLU
    h = jnp.dot(h, w2_ref[...], preferred_element_type=f32) + b2_ref[...]
    h = jnp.maximum(h, 0.0)
    # fusion Linear over concat(text_feat, audio_feat) == one dot vs stacked wf1
    h = jnp.dot(h, w3_ref[...], preferred_element_type=f32) + b3_ref[...]
    h = jnp.maximum(h, 0.0)
    # output Linear, lane-padded to a dense 128-wide store
    out = jnp.dot(h, w4_ref[...], preferred_element_type=f32) + b4_ref[...]
    out_ref[...] = out.astype(out_ref.dtype)


# ---------------------------------------------------------------------------
# Parameter init (PyTorch nn.Linear layout, pre-transposed to (in, out)).
# ---------------------------------------------------------------------------
def init_params(key, text_dim, audio_dim, hidden_dim, output_dim):
    keys = jax.random.split(key, 12)

    def linear(kw, kb, fan_in, fan_out):
        bound = 1.0 / jnp.sqrt(jnp.float32(fan_in))
        w = jax.random.uniform(kw, (fan_in, fan_out), jnp.float32, -bound, bound)
        b = jax.random.uniform(kb, (1, fan_out), jnp.float32, -bound, bound)
        return w, b

    wt1, bt1 = linear(keys[0], keys[1], text_dim, hidden_dim)
    wt2, bt2 = linear(keys[2], keys[3], hidden_dim, hidden_dim)
    wa1, ba1 = linear(keys[4], keys[5], audio_dim, hidden_dim)
    wa2, ba2 = linear(keys[6], keys[7], hidden_dim, hidden_dim)
    wf1, bf1 = linear(keys[8], keys[9], 2 * hidden_dim, hidden_dim)
    wf2, bf2 = linear(keys[10], keys[11], hidden_dim, output_dim)

    return {
        "wt1": wt1, "bt1": bt1, "wt2": wt2, "bt2": bt2,
        "wa1": wa1, "ba1": ba1, "wa2": wa2, "ba2": ba2,
        "wf1": wf1, "bf1": bf1, "wf2": wf2, "bf2": bf2,
    }


# ---------------------------------------------------------------------------
# One-time packing into fused, lane-aligned kernel operands.
# ---------------------------------------------------------------------------
def pack_params(params, text_dim, audio_dim, hidden_dim, output_dim):
    k_in = text_dim + audio_dim
    k_pad = _round_up(k_in, 128)
    out_pad = _round_up(output_dim, 128)
    h2 = 2 * hidden_dim

    # Layer 1: block-diagonal so [text | audio | 0-pad] @ w1 = [text@wt1 | audio@wa1]
    w1 = jnp.zeros((k_pad, h2), jnp.float32)
    w1 = w1.at[:text_dim, :hidden_dim].set(params["wt1"])
    w1 = w1.at[text_dim:k_in, hidden_dim:].set(params["wa1"])
    b1 = jnp.concatenate([params["bt1"], params["ba1"]], axis=1)

    # Layer 2: block-diagonal second Linears of each branch.
    w2 = jnp.zeros((h2, h2), jnp.float32)
    w2 = w2.at[:hidden_dim, :hidden_dim].set(params["wt2"])
    w2 = w2.at[hidden_dim:, hidden_dim:].set(params["wa2"])
    b2 = jnp.concatenate([params["bt2"], params["ba2"]], axis=1)

    # Fusion layer 1: concat(t, a) @ wf1 == [t | a] @ stacked wf1 directly.
    w3 = params["wf1"]                      # (2H, H)
    b3 = params["bf1"]

    # Fusion layer 2: pad output lanes to 128 for dense stores.
    w4 = jnp.zeros((hidden_dim, out_pad), jnp.float32)
    w4 = w4.at[:, :output_dim].set(params["wf2"])
    b4 = jnp.zeros((1, out_pad), jnp.float32)
    b4 = b4.at[:, :output_dim].set(params["bf2"])

    return {"w1": w1, "b1": b1, "w2": w2, "b2": b2,
            "w3": w3, "b3": b3, "w4": w4, "b4": b4}


# ---------------------------------------------------------------------------
# Wrapper: batch-gridded pallas_call with resident weights.
# ---------------------------------------------------------------------------
def multimodal_regressor(text_input, audio_input, packed, output_dim, *, tile_b=256):
    batch, text_dim = text_input.shape
    audio_dim = audio_input.shape[1]
    k_in = text_dim + audio_dim
    k_pad = packed["w1"].shape[0]
    out_pad = packed["w4"].shape[1]

    # Batch tile: multiple of 8 sublanes; pad batch so the grid divides exactly.
    tile_b = min(tile_b, _round_up(batch, 8))
    b_pad = _round_up(batch, tile_b)
    grid = (b_pad // tile_b,)

    # Layout plumbing (wrapper-side): concat text+audio, zero-pad K to 128.
    x = jnp.zeros((b_pad, k_pad), jnp.float32)
    x = x.at[:batch, :text_dim].set(text_input)
    x = x.at[:batch, text_dim:k_in].set(audio_input)

    weight_args = (packed["w1"], packed["b1"], packed["w2"], packed["b2"],
                   packed["w3"], packed["b3"], packed["w4"], packed["b4"])

    def resident(arr):
        # Whole array as one block, same block index every grid step -> stays
        # resident in VMEM (no re-DMA across batch tiles).
        return pl.BlockSpec(arr.shape, lambda i: (0,) * arr.ndim)

    # VMEM budget: resident weights + double-buffered activation tiles + headroom,
    # capped at 64 MiB so the same tiling also fits v7x's smaller VMEM.
    weight_bytes = sum(int(a.size) * a.dtype.itemsize for a in weight_args)
    act_bytes = 2 * tile_b * (k_pad + out_pad) * 4
    vmem_limit = int(min(64 << 20, weight_bytes + act_bytes + (8 << 20)))

    out_padded = pl.pallas_call(
        _mmr_kernel,
        out_shape=jax.ShapeDtypeStruct((b_pad, out_pad), jnp.float32),
        grid=grid,
        in_specs=[pl.BlockSpec((tile_b, k_pad), lambda i: (i, 0))]
                 + [resident(a) for a in weight_args],
        out_specs=pl.BlockSpec((tile_b, out_pad), lambda i: (i, 0)),
        compiler_params=pltpu.CompilerParams(
            dimension_semantics=("parallel",),   # shard batch across v7x's 2 TCs
            vmem_limit_bytes=vmem_limit),
    )(x, *weight_args)

    return out_padded[:batch, :output_dim]


# ---------------------------------------------------------------------------
# Pure-JAX reference (PyTorch forward semantics).
# ---------------------------------------------------------------------------
def _reference(text_input, audio_input, p):
    relu = lambda v: jnp.maximum(v, 0.0)
    t = relu(text_input @ p["wt1"] + p["bt1"])
    t = relu(t @ p["wt2"] + p["bt2"])
    a = relu(audio_input @ p["wa1"] + p["ba1"])
    a = relu(a @ p["wa2"] + p["ba2"])
    fused = jnp.concatenate([t, a], axis=1)
    f = relu(fused @ p["wf1"] + p["bf1"])
    return f @ p["wf2"] + p["bf2"]


if __name__ == "__main__":
    # Small shapes consistent with the module's forward.
    batch, text_dim, audio_dim, hidden_dim, output_dim = 8, 64, 48, 32, 4

    key = jax.random.PRNGKey(0)
    k_text, k_audio, k_params = jax.random.split(key, 3)

    text_input = jax.random.normal(k_text, (batch, text_dim), jnp.float32)
    audio_input = jax.random.normal(k_audio, (batch, audio_dim), jnp.float32)
    params = init_params(k_params, text_dim, audio_dim, hidden_dim, output_dim)
    packed = pack_params(params, text_dim, audio_dim, hidden_dim, output_dim)

    out = multimodal_regressor(text_input, audio_input, packed, output_dim)
    out = jax.block_until_ready(out)

    ref = _reference(text_input, audio_input, params)
    assert out.shape == (batch, output_dim)
    assert jnp.allclose(out, ref, atol=1e-5, rtol=1e-5), "kernel != reference"

    print("KERNEL_OK")
</pallas_src>

<mosaic_0001>
module attributes {stable_mosaic.version = 11 : i64} {
  func.func @_mmr_kernel(%arg0: i32, %arg1: memref<8x128xf32, #tpu.memory_space<vmem>>, %arg2: memref<128x64xf32, #tpu.memory_space<vmem>>, %arg3: memref<1x64xf32, #tpu.memory_space<vmem>>, %arg4: memref<64x64xf32, #tpu.memory_space<vmem>>, %arg5: memref<1x64xf32, #tpu.memory_space<vmem>>, %arg6: memref<64x32xf32, #tpu.memory_space<vmem>>, %arg7: memref<1x32xf32, #tpu.memory_space<vmem>>, %arg8: memref<32x128xf32, #tpu.memory_space<vmem>>, %arg9: memref<1x128xf32, #tpu.memory_space<vmem>>, %arg10: memref<8x128xf32, #tpu.memory_space<vmem>>) attributes {dimension_semantics = [#tpu.dimension_semantics<parallel>], iteration_bounds = array<i64: 1>, scalar_prefetch = 0 : i64, scratch_operands = 0 : i64, tpu.core_type = #tpu.core_type<tc>, window_params = [{transform_indices = @transform_0, window_bounds = array<i64: 8, 128>}, {pipeline_mode = #tpu.pipeline_mode<synchronous>, transform_indices = @transform_1, window_bounds = array<i64: 128, 64>}, {pipeline_mode = #tpu.pipeline_mode<synchronous>, transform_indices = @transform_2, window_bounds = array<i64: 1, 64>}, {pipeline_mode = #tpu.pipeline_mode<synchronous>, transform_indices = @transform_3, window_bounds = array<i64: 64, 64>}, {pipeline_mode = #tpu.pipeline_mode<synchronous>, transform_indices = @transform_4, window_bounds = array<i64: 1, 64>}, {pipeline_mode = #tpu.pipeline_mode<synchronous>, transform_indices = @transform_5, window_bounds = array<i64: 64, 32>}, {pipeline_mode = #tpu.pipeline_mode<synchronous>, transform_indices = @transform_6, window_bounds = array<i64: 1, 32>}, {pipeline_mode = #tpu.pipeline_mode<synchronous>, transform_indices = @transform_7, window_bounds = array<i64: 32, 128>}, {pipeline_mode = #tpu.pipeline_mode<synchronous>, transform_indices = @transform_8, window_bounds = array<i64: 1, 128>}, {transform_indices = @transform_9, window_bounds = array<i64: 8, 128>}]} {
    %c0 = arith.constant 0 : index
    %c0_0 = arith.constant 0 : index
    %0 = vector.load %arg1[%c0, %c0_0] : memref<8x128xf32, #tpu.memory_space<vmem>>, vector<8x128xf32>
    %c0_1 = arith.constant 0 : index
    %c0_2 = arith.constant 0 : index
    %1 = vector.load %arg2[%c0_1, %c0_2] : memref<128x64xf32, #tpu.memory_space<vmem>>, vector<128x64xf32>
    %cst = arith.constant dense<0.000000e+00> : vector<8x64xf32>
    %2 = tpu.matmul %0, %1, %cst {dimension_numbers = #tpu.dot_dimension_numbers<[1], [0], [0], [1], [0, 0, 1, 1], [], []>} : vector<8x128xf32>, vector<128x64xf32>, vector<8x64xf32> -> vector<8x64xf32>
    %c0_3 = arith.constant 0 : index
    %c0_4 = arith.constant 0 : index
    %3 = vector.load %arg3[%c0_3, %c0_4] : memref<1x64xf32, #tpu.memory_space<vmem>>, vector<1x64xf32>
    %4 = vector.broadcast %3 : vector<1x64xf32> to vector<8x64xf32>
    %5 = arith.addf %2, %4 : vector<8x64xf32>
    %cst_5 = arith.constant 0.000000e+00 : f32
    %6 = vector.broadcast %cst_5 : f32 to vector<8x64xf32>
    %7 = arith.maximumf %5, %6 : vector<8x64xf32>
    %c0_6 = arith.constant 0 : index
    %c0_7 = arith.constant 0 : index
    %8 = vector.load %arg4[%c0_6, %c0_7] : memref<64x64xf32, #tpu.memory_space<vmem>>, vector<64x64xf32>
    %cst_8 = arith.constant dense<0.000000e+00> : vector<8x64xf32>
    %9 = tpu.matmul %7, %8, %cst_8 {dimension_numbers = #tpu.dot_dimension_numbers<[1], [0], [0], [1], [0, 0, 1, 1], [], []>} : vector<8x64xf32>, vector<64x64xf32>, vector<8x64xf32> -> vector<8x64xf32>
    %c0_9 = arith.constant 0 : index
    %c0_10 = arith.constant 0 : index
    %10 = vector.load %arg5[%c0_9, %c0_10] : memref<1x64xf32, #tpu.memory_space<vmem>>, vector<1x64xf32>
    %11 = vector.broadcast %10 : vector<1x64xf32> to vector<8x64xf32>
    %12 = arith.addf %9, %11 : vector<8x64xf32>
    %cst_11 = arith.constant 0.000000e+00 : f32
    %13 = vector.broadcast %cst_11 : f32 to vector<8x64xf32>
    %14 = arith.maximumf %12, %13 : vector<8x64xf32>
    %c0_12 = arith.constant 0 : index
    %c0_13 = arith.constant 0 : index
    %15 = vector.load %arg6[%c0_12, %c0_13] : memref<64x32xf32, #tpu.memory_space<vmem>>, vector<64x32xf32>
    %cst_14 = arith.constant dense<0.000000e+00> : vector<8x32xf32>
    %16 = tpu.matmul %14, %15, %cst_14 {dimension_numbers = #tpu.dot_dimension_numbers<[1], [0], [0], [1], [0, 0, 1, 1], [], []>} : vector<8x64xf32>, vector<64x32xf32>, vector<8x32xf32> -> vector<8x32xf32>
    %c0_15 = arith.constant 0 : index
    %c0_16 = arith.constant 0 : index
    %17 = vector.load %arg7[%c0_15, %c0_16] : memref<1x32xf32, #tpu.memory_space<vmem>>, vector<1x32xf32>
    %18 = vector.broadcast %17 : vector<1x32xf32> to vector<8x32xf32>
    %19 = arith.addf %16, %18 : vector<8x32xf32>
    %cst_17 = arith.constant 0.000000e+00 : f32
    %20 = vector.broadcast %cst_17 : f32 to vector<8x32xf32>
    %21 = arith.maximumf %19, %20 : vector<8x32xf32>
    %c0_18 = arith.constant 0 : index
    %c0_19 = arith.constant 0 : index
    %22 = vector.load %arg8[%c0_18, %c0_19] : memref<32x128xf32, #tpu.memory_space<vmem>>, vector<32x128xf32>
    %cst_20 = arith.constant dense<0.000000e+00> : vector<8x128xf32>
    %23 = tpu.matmul %21, %22, %cst_20 {dimension_numbers = #tpu.dot_dimension_numbers<[1], [0], [0], [1], [0, 0, 1, 1], [], []>} : vector<8x32xf32>, vector<32x128xf32>, vector<8x128xf32> -> vector<8x128xf32>
    %c0_21 = arith.constant 0 : index
    %c0_22 = arith.constant 0 : index
    %24 = vector.load %arg9[%c0_21, %c0_22] : memref<1x128xf32, #tpu.memory_space<vmem>>, vector<1x128xf32>
    %25 = vector.broadcast %24 : vector<1x128xf32> to vector<8x128xf32>
    %26 = arith.addf %23, %25 : vector<8x128xf32>
    %c0_23 = arith.constant 0 : index
    %c0_24 = arith.constant 0 : index
    %27 = vector.load %arg10[%c0_23, %c0_24] : memref<8x128xf32, #tpu.memory_space<vmem>>, vector<8x128xf32>
    tpu.vector_store %arg10[%c0_23, %c0_24], %26 {strides = array<i32>} : memref<8x128xf32, #tpu.memory_space<vmem>>, vector<8x128xf32>,
    return
  }
  func.func @transform_0(%arg0: i32) -> (i32, i32) {
    %c0_i32 = arith.constant 0 : i32
    %c0_i32_0 = arith.constant 0 : i32
    return %arg0, %c0_i32 : i32, i32
  }
  func.func @transform_1(%arg0: i32) -> (i32, i32) {
    %c0_i32 = arith.constant 0 : i32
    %c0_i32_0 = arith.constant 0 : i32
    %c0_i32_1 = arith.constant 0 : i32
    return %c0_i32, %c0_i32_0 : i32, i32
  }
  func.func @transform_2(%arg0: i32) -> (i32, i32) {
    %c0_i32 = arith.constant 0 : i32
    %c0_i32_0 = arith.constant 0 : i32
    %c0_i32_1 = arith.constant 0 : i32
    return %c0_i32, %c0_i32_0 : i32, i32
  }
  func.func @transform_3(%arg0: i32) -> (i32, i32) {
    %c0_i32 = arith.constant 0 : i32
    %c0_i32_0 = arith.constant 0 : i32
    %c0_i32_1 = arith.constant 0 : i32
    return %c0_i32, %c0_i32_0 : i32, i32
  }
  func.func @transform_4(%arg0: i32) -> (i32, i32) {
    %c0_i32 = arith.constant 0 : i32
    %c0_i32_0 = arith.constant 0 : i32
    %c0_i32_1 = arith.constant 0 : i32
    return %c0_i32, %c0_i32_0 : i32, i32
  }
  func.func @transform_5(%arg0: i32) -> (i32, i32) {
    %c0_i32 = arith.constant 0 : i32
    %c0_i32_0 = arith.constant 0 : i32
    %c0_i32_1 = arith.constant 0 : i32
    return %c0_i32, %c0_i32_0 : i32, i32
  }
  func.func @transform_6(%arg0: i32) -> (i32, i32) {
    %c0_i32 = arith.constant 0 : i32
    %c0_i32_0 = arith.constant 0 : i32
    %c0_i32_1 = arith.constant 0 : i32
    return %c0_i32, %c0_i32_0 : i32, i32
  }
  func.func @transform_7(%arg0: i32) -> (i32, i32) {
    %c0_i32 = arith.constant 0 : i32
    %c0_i32_0 = arith.constant 0 : i32
    %c0_i32_1 = arith.constant 0 : i32
    return %c0_i32, %c0_i32_0 : i32, i32
  }
  func.func @transform_8(%arg0: i32) -> (i32, i32) {
    %c0_i32 = arith.constant 0 : i32
    %c0_i32_0 = arith.constant 0 : i32
    %c0_i32_1 = arith.constant 0 : i32
    return %c0_i32, %c0_i32_0 : i32, i32
  }
  func.func @transform_9(%arg0: i32) -> (i32, i32) {
    %c0_i32 = arith.constant 0 : i32
    %c0_i32_0 = arith.constant 0 : i32
    return %arg0, %c0_i32 : i32, i32
  }
}

</mosaic_0001>

<llo_original>
// kernel: tpu_custom_call.1
$region0: #{tpu_custom_call.1}
  #allocation0 [shape = 'u32[]', space=smem, size = 0x4, offset = 0x4, fixed_abs, tag = 'smem constant byte address 0x4 - core index']
  #allocation1 [shape = 'u32[144,128]{1,0:T(1,128)}', space=vmem, size = 0x12000, scoped, tag = 'internal scratch']
  %s0 = inlined_call_operand.vmem [shape: f32[8,128], index: 0, kind: input, shape index: {}]
  %s1 = inlined_call_operand.vmem [shape: f32[128,64], index: 1, kind: input, shape index: {}]
  %s2 = inlined_call_operand.vmem [shape: f32[1,64], index: 2, kind: input, shape index: {}]
  %s3 = inlined_call_operand.vmem [shape: f32[64,64], index: 3, kind: input, shape index: {}]
  %s4 = inlined_call_operand.vmem [shape: f32[1,64], index: 4, kind: input, shape index: {}]
  %s5 = inlined_call_operand.vmem [shape: f32[64,32], index: 5, kind: input, shape index: {}]
  %s6 = inlined_call_operand.vmem [shape: f32[1,32], index: 6, kind: input, shape index: {}]
  %s7 = inlined_call_operand.vmem [shape: f32[32,128], index: 7, kind: input, shape index: {}]
  %s8 = inlined_call_operand.vmem [shape: f32[1,128], index: 8, kind: input, shape index: {}]
  %s9 = inlined_call_operand.hbm [shape: f32[8,128], index: 9, kind: output, shape index: {}]
  %s10 = sld [smem:[#allocation0]]
  $region46: #{tpu_custom_call.1} parent=0
    _
  %s12 = ssub.s32 1, %s10
  %s13 = scalar_select 0, %s12, %s10
  $region1: #{tpu_custom_call.1} parent=0
    #allocation2 [shape = 'u8[4096]{0}', space=vmem, size = 0x1000, scoped, tag = 'output window, operand 0, single buffered']
    #allocation3 [shape = 's32[1]{0}', space=sflag, size = 0x4, scoped, tag = 'scoped memory for tpu_custom_call.1']
    %14 = vsyncpa [#allocation3], 0
    // Predicated region
    $region2: #{tpu_custom_call.1} parent=1 // pred_check
      _
    $region3: #{tpu_custom_call.1} parent=1 // pred_check_branch
      %16 = sbr.rel (0) target = $region5
    $region4: #{tpu_custom_call.1} parent=1 // pred_region
      _
    $region5: #{tpu_custom_call.1} parent=1 // pred_fallthru
      _
    // Predicated region
    $region6: #{tpu_custom_call.1} parent=1 // pred_check
      _
    $region7: #{tpu_custom_call.1} parent=1 // pred_check_branch
      %18 = sbr.rel (0) target = $region9
    $region8: #{tpu_custom_call.1} parent=1 // pred_region
      _
    $region9: #{tpu_custom_call.1} parent=1 // pred_fallthru
      _
    // Predicated region
    $region10: #{tpu_custom_call.1} parent=1 // pred_check
      _
    $region11: #{tpu_custom_call.1} parent=1 // pred_check_branch
      %20 = sbr.rel (0) target = $region13
    $region12: #{tpu_custom_call.1} parent=1 // pred_region
      _
    $region13: #{tpu_custom_call.1} parent=1 // pred_fallthru
      _
    // Predicated region
    $region14: #{tpu_custom_call.1} parent=1 // pred_check
      _
    $region15: #{tpu_custom_call.1} parent=1 // pred_check_branch
      %22 = sbr.rel (0) target = $region17
    $region16: #{tpu_custom_call.1} parent=1 // pred_region
      _
    $region17: #{tpu_custom_call.1} parent=1 // pred_fallthru
      _
    // Predicated region
    $region18: #{tpu_custom_call.1} parent=1 // pred_check
      _
    $region19: #{tpu_custom_call.1} parent=1 // pred_check_branch
      %24 = sbr.rel (0) target = $region21
    $region20: #{tpu_custom_call.1} parent=1 // pred_region
      _
    $region21: #{tpu_custom_call.1} parent=1 // pred_fallthru
      _
    // Predicated region
    $region22: #{tpu_custom_call.1} parent=1 // pred_check
      _
    $region23: #{tpu_custom_call.1} parent=1 // pred_check_branch
      %26 = sbr.rel (0) target = $region25
    $region24: #{tpu_custom_call.1} parent=1 // pred_region
      _
    $region25: #{tpu_custom_call.1} parent=1 // pred_fallthru
      _
    // Predicated region
    $region26: #{tpu_custom_call.1} parent=1 // pred_check
      _
    $region27: #{tpu_custom_call.1} parent=1 // pred_check_branch
      %28 = sbr.rel (0) target = $region29
    $region28: #{tpu_custom_call.1} parent=1 // pred_region
      _
    $region29: #{tpu_custom_call.1} parent=1 // pred_fallthru
      _
    // Predicated region
    $region30: #{tpu_custom_call.1} parent=1 // pred_check
      _
    $region31: #{tpu_custom_call.1} parent=1 // pred_check_branch
      %30 = sbr.rel (0) target = $region33
    $region32: #{tpu_custom_call.1} parent=1 // pred_region
      _
    $region33: #{tpu_custom_call.1} parent=1 // pred_fallthru
      _
    // Predicated region
    $region34: #{tpu_custom_call.1} parent=1 // pred_check
      _
    $region35: #{tpu_custom_call.1} parent=1 // pred_check_branch
      %32 = sbr.rel (0) target = $region37
    $region36: #{tpu_custom_call.1} parent=1 // pred_region
      _
    $region37: #{tpu_custom_call.1} parent=1 // pred_fallthru
      _
    %v33 = vld [vmem:[%s0] sm:$0xff]
    %v34 = vld [vmem:[%s1] sm:$0xff]
    %v35 = vld [vmem:[%s1 + $0x8] sm:$0xff]
    %v36 = vld [vmem:[%s1 + $0x10] sm:$0xff]
    %v37 = vld [vmem:[%s1 + $0x18] sm:$0xff]
    %v38 = vld [vmem:[%s1 + $0x20] sm:$0xff]
    %v39 = vld [vmem:[%s1 + $0x28] sm:$0xff]
    %v40 = vld [vmem:[%s1 + $0x30] sm:$0xff]
    %v41 = vld [vmem:[%s1 + $0x38] sm:$0xff]
    %v42 = vld [vmem:[%s1 + $0x40] sm:$0xff]
    %v43 = vld [vmem:[%s1 + $0x48] sm:$0xff]
    %v44 = vld [vmem:[%s1 + $0x50] sm:$0xff]
    %v45 = vld [vmem:[%s1 + $0x58] sm:$0xff]
    %v46 = vld [vmem:[%s1 + $0x60] sm:$0xff]
    %v47 = vld [vmem:[%s1 + $0x68] sm:$0xff]
    %v48 = vld [vmem:[%s1 + $0x70] sm:$0xff]
    %v49 = vld [vmem:[%s1 + $0x78] sm:$0xff]
    %v50 = vld [vmem:[%s2] sm:$0x1]
    %v52 = vlaneseq
    %v53 = vshrl.u32 %v52, 7
    %v54 = vsub.s32 0, %v53
    %v55 = vrot.slane %v50, %v54
    %57 = vmatprep.subr.mxu0 0.0
    %58 = vmatpush1.msra.mxu0 %v34
    %59 = vmatprep.subr.mxu0 0.0
    %60 = vmatpush1.msra.mxu0 %v35
    %61 = vmatprep.subr.mxu0 0.0
    %62 = vmatpush1.msra.mxu0 %v36
    %63 = vmatprep.subr.mxu0 0.0
    %64 = vmatpush1.msra.mxu0 %v37
    %65 = vmatprep.subr.mxu0 0.0
    %66 = vmatpush1.msra.mxu0 %v38
    %67 = vmatprep.subr.mxu0 0.0
    %68 = vmatpush1.msra.mxu0 %v39
    %69 = vmatprep.subr.mxu0 0.0
    %70 = vmatpush1.msra.mxu0 %v40
    %71 = vmatprep.subr.mxu0 0.0
    %72 = vmatpush1.msra.mxu0 %v41
    %73 = vmatprep.subr.mxu0 0.0
    %74 = vmatpush1.msra.mxu0 %v42
    %75 = vmatprep.subr.mxu0 0.0
    %76 = vmatpush1.msra.mxu0 %v43
    %77 = vmatprep.subr.mxu0 0.0
    %78 = vmatpush1.msra.mxu0 %v44
    %79 = vmatprep.subr.mxu0 0.0
    %80 = vmatpush1.msra.mxu0 %v45
    %81 = vmatprep.subr.mxu0 0.0
    %82 = vmatpush1.msra.mxu0 %v46
    %83 = vmatprep.subr.mxu0 0.0
    %84 = vmatpush1.msra.mxu0 %v47
    %85 = vmatprep.subr.mxu0 0.0
    %86 = vmatpush1.msra.mxu0 %v48
    %87 = vmatprep.subr.mxu0 0.0
    %88 = vmatpush1.msra.mxu0 %v49
    %89 = vmatprep.subr.mxu0 0.0
    %90 = vmatpush1.msra.mxu0 0.0
    %91 = vmatprep.subr.mxu0 0.0
    %92 = vmatpush1.msra.mxu0 0.0
    %93 = vmatprep.subr.mxu0 0.0
    %94 = vmatpush1.msra.mxu0 0.0
    %95 = vmatprep.subr.mxu0 0.0
    %96 = vmatpush1.msra.mxu0 0.0
    %97 = vmatprep.subr.mxu0 0.0
    %98 = vmatpush1.msra.mxu0 0.0
    %99 = vmatprep.subr.mxu0 0.0
    %100 = vmatpush1.msra.mxu0 0.0
    %101 = vmatprep.subr.mxu0 0.0
    %102 = vmatpush1.msra.mxu0 0.0
    %103 = vmatprep.subr.mxu0 0.0
    %104 = vmatpush1.msra.mxu0 0.0
    %105 = vmatprep.subr.mxu0 0.0
    %106 = vmatpush1.msra.mxu0 0.0
    %107 = vmatprep.subr.mxu0 0.0
    %108 = vmatpush1.msra.mxu0 0.0
    %109 = vmatprep.subr.mxu0 0.0
    %110 = vmatpush1.msra.mxu0 0.0
    %111 = vmatprep.subr.mxu0 0.0
    %112 = vmatpush1.msra.mxu0 0.0
    %113 = vmatprep.subr.mxu0 0.0
    %114 = vmatpush1.msra.mxu0 0.0
    %115 = vmatprep.subr.mxu0 0.0
    %116 = vmatpush1.msra.mxu0 0.0
    %117 = vmatprep.subr.mxu0 0.0
    %118 = vmatpush1.msra.mxu0 0.0
    %119 = vmatprep.subr.mxu0 0.0
    %120 = vmatpush1.msra.mxu0 0.0
    %121 = vmatprep.mubr.f32.mxu0 0.0
    %122 = vmatmul.mubr.f32.gmra.mrb[0].mxu0 %v33
    %v123 = vpop.f32.mrb[0].mxu0
    %v124 = vadd.f32 %v55, %v123
    %v125 = vpop.f32.mrb[0].mxu0
    %126 = vdwg.mxu0
    %v127 = vmax.f32 %v124, 0.0
    %v128 = vld [vmem:[%s3] sm:$0xff]
    %v129 = vld [vmem:[%s3 + $0x8] sm:$0xff]
    %v130 = vld [vmem:[%s3 + $0x10] sm:$0xff]
    %v131 = vld [vmem:[%s3 + $0x18] sm:$0xff]
    %v132 = vld [vmem:[%s3 + $0x20] sm:$0xff]
    %v133 = vld [vmem:[%s3 + $0x28] sm:$0xff]
    %v134 = vld [vmem:[%s3 + $0x30] sm:$0xff]
    %v135 = vld [vmem:[%s3 + $0x38] sm:$0xff]
    %v136 = vld [vmem:[%s4] sm:$0x1]
    %v138 = vlaneseq
    %v139 = vshrl.u32 %v138, 7
    %v140 = vsub.s32 0, %v139
    %v141 = vrot.slane %v136, %v140
    %vm143 = vcmask 523264
    %v145 = vsel %vm143, %v127, 0
    %147 = vmatprep.subr.mxu0 0.0
    %148 = vmatpush1.msra.mxu0 %v128
    %149 = vmatprep.subr.mxu0 0.0
    %150 = vmatpush1.msra.mxu0 %v129
    %151 = vmatprep.subr.mxu0 0.0
    %152 = vmatpush1.msra.mxu0 %v130
    %153 = vmatprep.subr.mxu0 0.0
    %154 = vmatpush1.msra.mxu0 %v131
    %155 = vmatprep.subr.mxu0 0.0
    %156 = vmatpush1.msra.mxu0 %v132
    %157 = vmatprep.subr.mxu0 0.0
    %158 = vmatpush1.msra.mxu0 %v133
    %159 = vmatprep.subr.mxu0 0.0
    %160 = vmatpush1.msra.mxu0 %v134
    %161 = vmatprep.subr.mxu0 0.0
    %162 = vmatpush1.msra.mxu0 %v135
    %163 = vmatprep.subr.mxu0 0.0
    %164 = vmatpush1.msra.mxu0 0.0
    %165 = vmatprep.subr.mxu0 0.0
    %166 = vmatpush1.msra.mxu0 0.0
    %167 = vmatprep.subr.mxu0 0.0
    %168 = vmatpush1.msra.mxu0 0.0
    %169 = vmatprep.subr.mxu0 0.0
    %170 = vmatpush1.msra.mxu0 0.0
    %171 = vmatprep.subr.mxu0 0.0
    %172 = vmatpush1.msra.mxu0 0.0
    %173 = vmatprep.subr.mxu0 0.0
    %174 = vmatpush1.msra.mxu0 0.0
    %175 = vmatprep.subr.mxu0 0.0
    %176 = vmatpush1.msra.mxu0 0.0
    %177 = vmatprep.subr.mxu0 0.0
    %178 = vmatpush1.msra.mxu0 0.0
    %179 = vmatprep.subr.mxu0 0.0
    %180 = vmatpush1.msra.mxu0 0.0
    %181 = vmatprep.subr.mxu0 0.0
    %182 = vmatpush1.msra.mxu0 0.0
    %183 = vmatprep.subr.mxu0 0.0
    %184 = vmatpush1.msra.mxu0 0.0
    %185 = vmatprep.subr.mxu0 0.0
    %186 = vmatpush1.msra.mxu0 0.0
    %187 = vmatprep.subr.mxu0 0.0
    %188 = vmatpush1.msra.mxu0 0.0
    %189 = vmatprep.subr.mxu0 0.0
    %190 = vmatpush1.msra.mxu0 0.0
    %191 = vmatprep.subr.mxu0 0.0
    %192 = vmatpush1.msra.mxu0 0.0
    %193 = vmatprep.subr.mxu0 0.0
    %194 = vmatpush1.msra.mxu0 0.0
    %195 = vmatprep.subr.mxu0 0.0
    %196 = vmatpush1.msra.mxu0 0.0
    %197 = vmatprep.subr.mxu0 0.0
    %198 = vmatpush1.msra.mxu0 0.0
    %199 = vmatprep.subr.mxu0 0.0
    %200 = vmatpush1.msra.mxu0 0.0
    %201 = vmatprep.subr.mxu0 0.0
    %202 = vmatpush1.msra.mxu0 0.0
    %203 = vmatprep.subr.mxu0 0.0
    %204 = vmatpush1.msra.mxu0 0.0
    %205 = vmatprep.subr.mxu0 0.0
    %206 = vmatpush1.msra.mxu0 0.0
    %207 = vmatprep.subr.mxu0 0.0
    %208 = vmatpush1.msra.mxu0 0.0
    %209 = vmatprep.subr.mxu0 0.0
    %210 = vmatpush1.msra.mxu0 0.0
    %211 = vmatprep.mubr.f32.mxu0 0.0
    %212 = vmatmul.mubr.f32.gmra.mrb[0].mxu0 %v145
    %v213 = vpop.f32.mrb[0].mxu0
    %v214 = vadd.f32 %v141, %v213
    %v215 = vpop.f32.mrb[0].mxu0
    %216 = vdwg.mxu0
    %v217 = vmax.f32 %v214, 0.0
    %v218 = vld [vmem:[%s5] sm:$0xff]
    %v219 = vld [vmem:[%s5 + $0x8] sm:$0xff]
    %v220 = vld [vmem:[%s5 + $0x10] sm:$0xff]
    %v221 = vld [vmem:[%s5 + $0x18] sm:$0xff]
    %v222 = vld [vmem:[%s5 + $0x20] sm:$0xff]
    %v223 = vld [vmem:[%s5 + $0x28] sm:$0xff]
    %v224 = vld [vmem:[%s5 + $0x30] sm:$0xff]
    %v225 = vld [vmem:[%s5 + $0x38] sm:$0xff]
    %v226 = vld [vmem:[%s6] sm:$0x1]
    %v228 = vlaneseq
    %v229 = vshrl.u32 %v228, 7
    %v230 = vsub.s32 0, %v229
    %v231 = vrot.slane %v226, %v230
    %v234 = vsel %vm143, %v217, 0
    %236 = vmatprep.subr.mxu0 0.0
    %237 = vmatpush1.msra.mxu0 %v218
    %238 = vmatprep.subr.mxu0 0.0
    %239 = vmatpush1.msra.mxu0 %v219
    %240 = vmatprep.subr.mxu0 0.0
    %241 = vmatpush1.msra.mxu0 %v220
    %242 = vmatprep.subr.mxu0 0.0
    %243 = vmatpush1.msra.mxu0 %v221
    %244 = vmatprep.subr.mxu0 0.0
    %245 = vmatpush1.msra.mxu0 %v222
    %246 = vmatprep.subr.mxu0 0.0
    %247 = vmatpush1.msra.mxu0 %v223
    %248 = vmatprep.subr.mxu0 0.0
    %249 = vmatpush1.msra.mxu0 %v224
    %250 = vmatprep.subr.mxu0 0.0
    %251 = vmatpush1.msra.mxu0 %v225
    %252 = vmatprep.subr.mxu0 0.0
    %253 = vmatpush1.msra.mxu0 0.0
    %254 = vmatprep.subr.mxu0 0.0
    %255 = vmatpush1.msra.mxu0 0.0
    %256 = vmatprep.subr.mxu0 0.0
    %257 = vmatpush1.msra.mxu0 0.0
    %258 = vmatprep.subr.mxu0 0.0
    %259 = vmatpush1.msra.mxu0 0.0
    %260 = vmatprep.subr.mxu0 0.0
    %261 = vmatpush1.msra.mxu0 0.0
    %262 = vmatprep.subr.mxu0 0.0
    %263 = vmatpush1.msra.mxu0 0.0
    %264 = vmatprep.subr.mxu0 0.0
    %265 = vmatpush1.msra.mxu0 0.0
    %266 = vmatprep.subr.mxu0 0.0
    %267 = vmatpush1.msra.mxu0 0.0
    %268 = vmatprep.subr.mxu0 0.0
    %269 = vmatpush1.msra.mxu0 0.0
    %270 = vmatprep.subr.mxu0 0.0
    %271 = vmatpush1.msra.mxu0 0.0
    %272 = vmatprep.subr.mxu0 0.0
    %273 = vmatpush1.msra.mxu0 0.0
    %274 = vmatprep.subr.mxu0 0.0
    %275 = vmatpush1.msra.mxu0 0.0
    %276 = vmatprep.subr.mxu0 0.0
    %277 = vmatpush1.msra.mxu0 0.0
    %278 = vmatprep.subr.mxu0 0.0
    %279 = vmatpush1.msra.mxu0 0.0
    %280 = vmatprep.subr.mxu0 0.0
    %281 = vmatpush1.msra.mxu0 0.0
    %282 = vmatprep.subr.mxu0 0.0
    %283 = vmatpush1.msra.mxu0 0.0
    %284 = vmatprep.subr.mxu0 0.0
    %285 = vmatpush1.msra.mxu0 0.0
    %286 = vmatprep.subr.mxu0 0.0
    %287 = vmatpush1.msra.mxu0 0.0
    %288 = vmatprep.subr.mxu0 0.0
    %289 = vmatpush1.msra.mxu0 0.0
    %290 = vmatprep.subr.mxu0 0.0
    %291 = vmatpush1.msra.mxu0 0.0
    %292 = vmatprep.subr.mxu0 0.0
    %293 = vmatpush1.msra.mxu0 0.0
    %294 = vmatprep.subr.mxu0 0.0
    %295 = vmatpush1.msra.mxu0 0.0
    %296 = vmatprep.subr.mxu0 0.0
    %297 = vmatpush1.msra.mxu0 0.0
    %298 = vmatprep.subr.mxu0 0.0
    %299 = vmatpush1.msra.mxu0 0.0
    %300 = vmatprep.mubr.f32.mxu0 0.0
    %301 = vmatmul.mubr.f32.gmra.mrb[0].mxu0 %v234
    %v302 = vpop.f32.mrb[0].mxu0
    %v303 = vadd.f32 %v231, %v302
    %v304 = vpop.f32.mrb[0].mxu0
    %305 = vdwg.mxu0
    %v306 = vmax.f32 %v303, 0.0
    %v307 = vld [vmem:[%s7] sm:$0xff]
    %v308 = vld [vmem:[%s7 + $0x8] sm:$0xff]
    %v309 = vld [vmem:[%s7 + $0x10] sm:$0xff]
    %v310 = vld [vmem:[%s7 + $0x18] sm:$0xff]
    %v311 = vld [vmem:[%s8] sm:$0x1]
    %v313 = vlaneseq
    %v314 = vshrl.u32 %v313, 7
    %v315 = vsub.s32 0, %v314
    %v316 = vrot.slane %v311, %v315
    %vm318 = vcmask 261120
    %v320 = vsel %vm318, %v306, 0
    %322 = vmatprep.subr.mxu0 0.0
    %323 = vmatpush1.msra.mxu0 %v307
    %324 = vmatprep.subr.mxu0 0.0
    %325 = vmatpush1.msra.mxu0 %v308
    %326 = vmatprep.subr.mxu0 0.0
    %327 = vmatpush1.msra.mxu0 %v309
    %328 = vmatprep.subr.mxu0 0.0
    %329 = vmatpush1.msra.mxu0 %v310
    %330 = vmatprep.subr.mxu0 0.0
    %331 = vmatpush1.msra.mxu0 0.0
    %332 = vmatprep.subr.mxu0 0.0
    %333 = vmatpush1.msra.mxu0 0.0
    %334 = vmatprep.subr.mxu0 0.0
    %335 = vmatpush1.msra.mxu0 0.0
    %336 = vmatprep.subr.mxu0 0.0
    %337 = vmatpush1.msra.mxu0 0.0
    %338 = vmatprep.subr.mxu0 0.0
    %339 = vmatpush1.msra.mxu0 0.0
    %340 = vmatprep.subr.mxu0 0.0
    %341 = vmatpush1.msra.mxu0 0.0
    %342 = vmatprep.subr.mxu0 0.0
    %343 = vmatpush1.msra.mxu0 0.0
    %344 = vmatprep.subr.mxu0 0.0
    %345 = vmatpush1.msra.mxu0 0.0
    %346 = vmatprep.subr.mxu0 0.0
    %347 = vmatpush1.msra.mxu0 0.0
    %348 = vmatprep.subr.mxu0 0.0
    %349 = vmatpush1.msra.mxu0 0.0
    %350 = vmatprep.subr.mxu0 0.0
    %351 = vmatpush1.msra.mxu0 0.0
    %352 = vmatprep.subr.mxu0 0.0
    %353 = vmatpush1.msra.mxu0 0.0
    %354 = vmatprep.subr.mxu0 0.0
    %355 = vmatpush1.msra.mxu0 0.0
    %356 = vmatprep.subr.mxu0 0.0
    %357 = vmatpush1.msra.mxu0 0.0
    %358 = vmatprep.subr.mxu0 0.0
    %359 = vmatpush1.msra.mxu0 0.0
    %360 = vmatprep.subr.mxu0 0.0
    %361 = vmatpush1.msra.mxu0 0.0
    %362 = vmatprep.subr.mxu0 0.0
    %363 = vmatpush1.msra.mxu0 0.0
    %364 = vmatprep.subr.mxu0 0.0
    %365 = vmatpush1.msra.mxu0 0.0
    %366 = vmatprep.subr.mxu0 0.0
    %367 = vmatpush1.msra.mxu0 0.0
    %368 = vmatprep.subr.mxu0 0.0
    %369 = vmatpush1.msra.mxu0 0.0
    %370 = vmatprep.subr.mxu0 0.0
    %371 = vmatpush1.msra.mxu0 0.0
    %372 = vmatprep.subr.mxu0 0.0
    %373 = vmatpush1.msra.mxu0 0.0
    %374 = vmatprep.subr.mxu0 0.0
    %375 = vmatpush1.msra.mxu0 0.0
    %376 = vmatprep.subr.mxu0 0.0
    %377 = vmatpush1.msra.mxu0 0.0
    %378 = vmatprep.subr.mxu0 0.0
    %379 = vmatpush1.msra.mxu0 0.0
    %380 = vmatprep.subr.mxu0 0.0
    %381 = vmatpush1.msra.mxu0 0.0
    %382 = vmatprep.subr.mxu0 0.0
    %383 = vmatpush1.msra.mxu0 0.0
    %384 = vmatprep.subr.mxu0 0.0
    %385 = vmatpush1.msra.mxu0 0.0
    %386 = vmatprep.mubr.f32.mxu0 0.0
    %387 = vmatmul.mubr.f32.gmra.mrb[0].mxu0 %v320
    %v388 = vpop.f32.mrb[0].mxu0
    %v389 = vadd.f32 %v316, %v388
    %v390 = vpop.f32.mrb[0].mxu0
    %391 = vdwg.mxu0
    %392 = vst [vmem:[#allocation2] sm:$0xff] %v389
    // Predicated region
    $region38: #{tpu_custom_call.1} parent=1 // pred_check
      _
    $region39: #{tpu_custom_call.1} parent=1 // pred_check_branch
      %394 = sbr.rel (0) target = $region41
    $region40: #{tpu_custom_call.1} parent=1 // pred_region
      %s396 = ssub.s32 128, 128
      %397 = vsyncadd [#allocation3], %s396
      %s399 = sshll.u32 [#allocation2], 4
      %s400 = int_to_ptr.vmem [resolvable:$true] %s399
      %402 = dma.vmem_to_hbm [thread:$0]  %s400, 128, %s9, [#allocation3]
    $region41: #{tpu_custom_call.1} parent=1 // pred_fallthru
      _
    // Predicated region
    $region42: #{tpu_custom_call.1} parent=1 // pred_check
      _
    $region43: #{tpu_custom_call.1} parent=1 // pred_check_branch
      %404 = sbr.rel (0) target = $region45
    $region44: #{tpu_custom_call.1} parent=1 // pred_region
      %405 = dma.done [#allocation3], 128
    $region45: #{tpu_custom_call.1} parent=1 // pred_fallthru
      _
    %406 = vsyncpa [#allocation3], 1

</llo_original>
